<compile_context>
chip_gen: v5e
topology: v5e:2x2
jax: 0.10.0
libtpu: 0.0.40
codegen_flags: <defaults>
</compile_context>

<pallas_src>
import jax
import jax.numpy as jnp
from jax import lax
from jax.experimental import pallas as pl
from jax.experimental.pallas import tpu as pltpu

_LANE = 128
_SUBLANE = 8


def _round_up(n, m):
    return (n + m - 1) // m * m


def _make_kernel(has_mask, has_bias, mxu_dtype):
    """Build a kernel specialized on the (mask, bias) presence flags."""

    def kernel(*refs):
        it = iter(refs)
        x_ref = next(it)                            # (TILE_B, D_in_p)
        mask_ref = next(it) if has_mask else None   # (TILE_B, D_in_p)
        w1_ref = next(it)                           # (H_p, D_in_p)  native layout
        b1_ref = next(it)                           # (1, H_p)
        w2_ref = next(it)                           # (D_out_p, H_p) native layout
        b2_ref = next(it)                           # (1, D_out_p)
        bias_ref = next(it) if has_bias else None   # (1, H_p)
        out_ref = next(it)                          # (TILE_B, D_out_p)
        h3_ref = next(it)                           # (TILE_B, H_p)

        # masked = x * mask  (f32 elementwise on the VPU; v5e has no bf16 VPU)
        masked = x_ref[...].astype(jnp.float32)
        if has_mask:
            masked = masked * mask_ref[...].astype(jnp.float32)
        masked = masked.astype(mxu_dtype)

        # fc1: contract dim 1 of x with dim 1 of w1 -> MXU consumes w1 in its
        # native (H, D_in) layout; accumulate in f32.
        h = lax.dot_general(
            masked, w1_ref[...],
            dimension_numbers=(((1,), (1,)), ((), ())),
            preferred_element_type=jnp.float32,
        ) + b1_ref[...]

        h3 = jnp.maximum(h, 0.0)                    # ReLU in f32
        if has_bias:
            h3 = h3 + bias_ref[...]
        h3_ref[...] = h3.astype(h3_ref.dtype)

        # fc2: contract dim 1 of h3 with dim 1 of w2 (native (D_out, H) layout).
        out = lax.dot_general(
            h3.astype(mxu_dtype), w2_ref[...],
            dimension_numbers=(((1,), (1,)), ((), ())),
            preferred_element_type=jnp.float32,
        ) + b2_ref[...]
        out_ref[...] = out.astype(out_ref.dtype)

    return kernel


def _choose_tile_b(batch, d_in_p, h_p, d_out_p, has_mask, mxu_bytes,
                   budget_bytes, max_tile_b):
    """Largest batch tile whose double-buffered operands plus the resident
    weights fit the VMEM budget (conservative enough for v7x's 64 MiB)."""
    weight_bytes = (h_p * d_in_p + d_out_p * h_p) * mxu_bytes \
        + (2 * h_p + d_out_p) * 4
    per_row = d_in_p * mxu_bytes * (2 if has_mask else 1) + (h_p + d_out_p) * 4
    tile = _SUBLANE
    for cand in (512, 256, 128, 64, 32, 16, 8):
        if cand > max_tile_b:
            continue
        if weight_bytes + 2 * per_row * cand <= budget_bytes:
            tile = cand
            break
    return min(tile, _round_up(batch, _SUBLANE))


def masked_perceptron(x, w1, b1, w2, b2, mask=None, bias=None, *,
                      compute_dtype=jnp.bfloat16,
                      max_tile_b=512,
                      vmem_budget_bytes=20 * 1024 * 1024):
    """Pallas equivalent of MaskedPerceptron.forward(x, mask, bias).

    PyTorch layouts: w1 (H, D_in), b1 (H,), w2 (D_out, H), b2 (D_out,),
    bias broadcastable to (1, H).  Returns (out, h3) in float32.
    (In a real deployment the padded / cast weights should be prepared once
    outside the hot path; here they are prepared per call for simplicity.)
    """
    B, D_in = x.shape
    H = w1.shape[0]
    D_out = w2.shape[0]
    has_mask = mask is not None
    has_bias = bias is not None

    # Lane-dense padding of the feature dims (last dims -> multiples of 128).
    d_in_p = _round_up(D_in, _LANE)
    h_p = _round_up(H, _LANE)
    d_out_p = _round_up(D_out, _LANE)

    mxu_bytes = jnp.dtype(compute_dtype).itemsize
    tile_b = _choose_tile_b(B, d_in_p, h_p, d_out_p, has_mask, mxu_bytes,
                            vmem_budget_bytes, max_tile_b)
    b_p = _round_up(B, tile_b)
    grid = (b_p // tile_b,)

    f32 = jnp.float32
    x_p = jnp.pad(x.astype(f32), ((0, b_p - B), (0, d_in_p - D_in)))
    x_p = x_p.astype(compute_dtype)
    w1_p = jnp.pad(w1.astype(f32), ((0, h_p - H), (0, d_in_p - D_in)))
    w1_p = w1_p.astype(compute_dtype)
    w2_p = jnp.pad(w2.astype(f32), ((0, d_out_p - D_out), (0, h_p - H)))
    w2_p = w2_p.astype(compute_dtype)
    b1_p = jnp.pad(b1.astype(f32).reshape(1, H), ((0, 0), (0, h_p - H)))
    b2_p = jnp.pad(b2.astype(f32).reshape(1, D_out),
                   ((0, 0), (0, d_out_p - D_out)))

    def batch_map(i):
        return (i, 0)

    def resident_map(i):
        return (0, 0)

    inputs = [x_p]
    in_specs = [pl.BlockSpec((tile_b, d_in_p), batch_map)]
    if has_mask:
        mask_p = jnp.pad(mask.astype(f32), ((0, b_p - B), (0, d_in_p - D_in)))
        inputs.append(mask_p.astype(compute_dtype))
        in_specs.append(pl.BlockSpec((tile_b, d_in_p), batch_map))
    inputs += [w1_p, b1_p, w2_p, b2_p]
    in_specs += [
        pl.BlockSpec((h_p, d_in_p), resident_map),
        pl.BlockSpec((1, h_p), resident_map),
        pl.BlockSpec((d_out_p, h_p), resident_map),
        pl.BlockSpec((1, d_out_p), resident_map),
    ]
    if has_bias:
        bias_p = jnp.broadcast_to(jnp.asarray(bias, f32), (1, H))
        bias_p = jnp.pad(bias_p, ((0, 0), (0, h_p - H)))
        inputs.append(bias_p)
        in_specs.append(pl.BlockSpec((1, h_p), resident_map))

    out_specs = (pl.BlockSpec((tile_b, d_out_p), batch_map),
                 pl.BlockSpec((tile_b, h_p), batch_map))
    out_shape = (jax.ShapeDtypeStruct((b_p, d_out_p), f32),
                 jax.ShapeDtypeStruct((b_p, h_p), f32))

    out_p, h3_p = pl.pallas_call(
        _make_kernel(has_mask, has_bias, compute_dtype),
        grid=grid,
        in_specs=in_specs,
        out_specs=out_specs,
        out_shape=out_shape,
        compiler_params=pltpu.CompilerParams(
            dimension_semantics=("parallel",),
            vmem_limit_bytes=32 * 1024 * 1024,
        ),
    )(*inputs)

    return out_p[:B, :D_out], h3_p[:B, :H]


def _reference(x, w1, b1, w2, b2, mask=None, bias=None):
    masked = x * mask if mask is not None else x
    h = masked @ w1.T + b1
    h2 = jnp.maximum(h, 0.0)
    h3 = h2 + bias if bias is not None else h2
    out = h3 @ w2.T + b2
    return out, h3


if __name__ == "__main__":
    key = jax.random.PRNGKey(0)

    # --- small shapes consistent with the module ---------------------------
    B, D_in, H, D_out = 8, 16, 32, 8
    ks = jax.random.split(key, 7)
    lim1 = 1.0 / (D_in ** 0.5)
    lim2 = 1.0 / (H ** 0.5)
    w1 = jax.random.uniform(ks[0], (H, D_in), jnp.float32, -lim1, lim1)
    b1 = jax.random.uniform(ks[1], (H,), jnp.float32, -lim1, lim1)
    w2 = jax.random.uniform(ks[2], (D_out, H), jnp.float32, -lim2, lim2)
    b2 = jax.random.uniform(ks[3], (D_out,), jnp.float32, -lim2, lim2)
    x = jax.random.normal(ks[4], (B, D_in), jnp.float32)
    mask = (jax.random.uniform(ks[5], (B, D_in)) > 0.3).astype(jnp.float32)
    bias = jax.random.normal(ks[6], (1, H), jnp.float32) * 0.1

    ref_out, ref_h3 = _reference(x, w1, b1, w2, b2, mask, bias)

    # 1) default bf16-MXU-operand / f32-accumulate path.
    out, h3 = masked_perceptron(x, w1, b1, w2, b2, mask=mask, bias=bias)
    out, h3 = jax.block_until_ready((out, h3))
    assert out.shape == (B, D_out) and h3.shape == (B, H)
    assert jnp.allclose(out, ref_out, atol=5e-2, rtol=5e-2), "out (bf16) mismatch"
    assert jnp.allclose(h3, ref_h3, atol=5e-2, rtol=5e-2), "h3 (bf16) mismatch"

    # 2) exact-f32 path, tight tolerance.
    out32, h332 = masked_perceptron(x, w1, b1, w2, b2, mask=mask, bias=bias,
                                    compute_dtype=jnp.float32)
    out32, h332 = jax.block_until_ready((out32, h332))
    assert jnp.allclose(out32, ref_out, atol=1e-5, rtol=1e-5), "out (f32) mismatch"
    assert jnp.allclose(h332, ref_h3, atol=1e-5, rtol=1e-5), "h3 (f32) mismatch"

    # 3) specialized no-mask / no-bias path.
    out_nm, h3_nm = masked_perceptron(x, w1, b1, w2, b2,
                                      compute_dtype=jnp.float32)
    out_nm, h3_nm = jax.block_until_ready((out_nm, h3_nm))
    ref_out_nm, ref_h3_nm = _reference(x, w1, b1, w2, b2, None, None)
    assert jnp.allclose(out_nm, ref_out_nm, atol=1e-5, rtol=1e-5), "out (no-mask) mismatch"
    assert jnp.allclose(h3_nm, ref_h3_nm, atol=1e-5, rtol=1e-5), "h3 (no-mask) mismatch"

    # 4) larger, lane-aligned shapes that exercise the multi-step batch grid.
    B2, D2, H2, O2 = 2048, 128, 256, 128
    kb = jax.random.split(jax.random.PRNGKey(1), 6)
    l1 = 1.0 / (D2 ** 0.5)
    l2 = 1.0 / (H2 ** 0.5)
    w1b = jax.random.uniform(kb[0], (H2, D2), jnp.float32, -l1, l1)
    b1b = jax.random.uniform(kb[1], (H2,), jnp.float32, -l1, l1)
    w2b = jax.random.uniform(kb[2], (O2, H2), jnp.float32, -l2, l2)
    b2b = jax.random.uniform(kb[3], (O2,), jnp.float32, -l2, l2)
    xb = jax.random.normal(kb[4], (B2, D2), jnp.float32)
    maskb = (jax.random.uniform(kb[5], (B2, D2)) > 0.5).astype(jnp.float32)
    outb, h3b = masked_perceptron(xb, w1b, b1b, w2b, b2b, mask=maskb,
                                  compute_dtype=jnp.float32)
    outb, h3b = jax.block_until_ready((outb, h3b))
    ref_outb, ref_h3b = _reference(xb, w1b, b1b, w2b, b2b, maskb, None)
    assert jnp.allclose(outb, ref_outb, atol=3e-2, rtol=3e-2), "out (grid) mismatch"
    assert jnp.allclose(h3b, ref_h3b, atol=3e-2, rtol=3e-2), "h3 (grid) mismatch"

    print("KERNEL_OK")
</pallas_src>

<mosaic_0001>
module attributes {stable_mosaic.version = 11 : i64} {
  func.func @kernel(%arg0: i32, %arg1: memref<8x128xbf16, #tpu.memory_space<vmem>>, %arg2: memref<8x128xbf16, #tpu.memory_space<vmem>>, %arg3: memref<128x128xbf16, #tpu.memory_space<vmem>>, %arg4: memref<1x128xf32, #tpu.memory_space<vmem>>, %arg5: memref<128x128xbf16, #tpu.memory_space<vmem>>, %arg6: memref<1x128xf32, #tpu.memory_space<vmem>>, %arg7: memref<1x128xf32, #tpu.memory_space<vmem>>, %arg8: memref<8x128xf32, #tpu.memory_space<vmem>>, %arg9: memref<8x128xf32, #tpu.memory_space<vmem>>) attributes {dimension_semantics = [#tpu.dimension_semantics<parallel>], iteration_bounds = array<i64: 1>, scalar_prefetch = 0 : i64, scratch_operands = 0 : i64, tpu.core_type = #tpu.core_type<tc>, window_params = [{transform_indices = @transform_0, window_bounds = array<i64: 8, 128>}, {transform_indices = @transform_1, window_bounds = array<i64: 8, 128>}, {pipeline_mode = #tpu.pipeline_mode<synchronous>, transform_indices = @transform_2, window_bounds = array<i64: 128, 128>}, {pipeline_mode = #tpu.pipeline_mode<synchronous>, transform_indices = @transform_3, window_bounds = array<i64: 1, 128>}, {pipeline_mode = #tpu.pipeline_mode<synchronous>, transform_indices = @transform_4, window_bounds = array<i64: 128, 128>}, {pipeline_mode = #tpu.pipeline_mode<synchronous>, transform_indices = @transform_5, window_bounds = array<i64: 1, 128>}, {pipeline_mode = #tpu.pipeline_mode<synchronous>, transform_indices = @transform_6, window_bounds = array<i64: 1, 128>}, {transform_indices = @transform_7, window_bounds = array<i64: 8, 128>}, {transform_indices = @transform_8, window_bounds = array<i64: 8, 128>}]} {
    %c0 = arith.constant 0 : index
    %c0_0 = arith.constant 0 : index
    %0 = vector.load %arg1[%c0, %c0_0] : memref<8x128xbf16, #tpu.memory_space<vmem>>, vector<8x128xbf16>
    %1 = arith.extf %0 : vector<8x128xbf16> to vector<8x128xf32>
    %c0_1 = arith.constant 0 : index
    %c0_2 = arith.constant 0 : index
    %2 = vector.load %arg2[%c0_1, %c0_2] : memref<8x128xbf16, #tpu.memory_space<vmem>>, vector<8x128xbf16>
    %3 = arith.extf %2 : vector<8x128xbf16> to vector<8x128xf32>
    %4 = arith.mulf %1, %3 : vector<8x128xf32>
    %5 = arith.truncf %4 : vector<8x128xf32> to vector<8x128xbf16>
    %c0_3 = arith.constant 0 : index
    %c0_4 = arith.constant 0 : index
    %6 = vector.load %arg3[%c0_3, %c0_4] : memref<128x128xbf16, #tpu.memory_space<vmem>>, vector<128x128xbf16>
    %cst = arith.constant dense<0.000000e+00> : vector<8x128xf32>
    %7 = tpu.matmul %5, %6, %cst {dimension_numbers = #tpu.dot_dimension_numbers<[1], [1], [0], [0], [0, 0, 1, 0], [], []>} : vector<8x128xbf16>, vector<128x128xbf16>, vector<8x128xf32> -> vector<8x128xf32>
    %c0_5 = arith.constant 0 : index
    %c0_6 = arith.constant 0 : index
    %8 = vector.load %arg4[%c0_5, %c0_6] : memref<1x128xf32, #tpu.memory_space<vmem>>, vector<1x128xf32>
    %9 = vector.broadcast %8 : vector<1x128xf32> to vector<8x128xf32>
    %10 = arith.addf %7, %9 : vector<8x128xf32>
    %cst_7 = arith.constant 0.000000e+00 : f32
    %11 = vector.broadcast %cst_7 : f32 to vector<8x128xf32>
    %12 = arith.maximumf %10, %11 : vector<8x128xf32>
    %c0_8 = arith.constant 0 : index
    %c0_9 = arith.constant 0 : index
    %13 = vector.load %arg7[%c0_8, %c0_9] : memref<1x128xf32, #tpu.memory_space<vmem>>, vector<1x128xf32>
    %14 = vector.broadcast %13 : vector<1x128xf32> to vector<8x128xf32>
    %15 = arith.addf %12, %14 : vector<8x128xf32>
    %c0_10 = arith.constant 0 : index
    %c0_11 = arith.constant 0 : index
    %16 = vector.load %arg9[%c0_10, %c0_11] : memref<8x128xf32, #tpu.memory_space<vmem>>, vector<8x128xf32>
    tpu.vector_store %arg9[%c0_10, %c0_11], %15 {strides = array<i32>} : memref<8x128xf32, #tpu.memory_space<vmem>>, vector<8x128xf32>,
    %17 = arith.truncf %15 : vector<8x128xf32> to vector<8x128xbf16>
    %c0_12 = arith.constant 0 : index
    %c0_13 = arith.constant 0 : index
    %18 = vector.load %arg5[%c0_12, %c0_13] : memref<128x128xbf16, #tpu.memory_space<vmem>>, vector<128x128xbf16>
    %cst_14 = arith.constant dense<0.000000e+00> : vector<8x128xf32>
    %19 = tpu.matmul %17, %18, %cst_14 {dimension_numbers = #tpu.dot_dimension_numbers<[1], [1], [0], [0], [0, 0, 1, 0], [], []>} : vector<8x128xbf16>, vector<128x128xbf16>, vector<8x128xf32> -> vector<8x128xf32>
    %c0_15 = arith.constant 0 : index
    %c0_16 = arith.constant 0 : index
    %20 = vector.load %arg6[%c0_15, %c0_16] : memref<1x128xf32, #tpu.memory_space<vmem>>, vector<1x128xf32>
    %21 = vector.broadcast %20 : vector<1x128xf32> to vector<8x128xf32>
    %22 = arith.addf %19, %21 : vector<8x128xf32>
    %c0_17 = arith.constant 0 : index
    %c0_18 = arith.constant 0 : index
    %23 = vector.load %arg8[%c0_17, %c0_18] : memref<8x128xf32, #tpu.memory_space<vmem>>, vector<8x128xf32>
    tpu.vector_store %arg8[%c0_17, %c0_18], %22 {strides = array<i32>} : memref<8x128xf32, #tpu.memory_space<vmem>>, vector<8x128xf32>,
    return
  }
  func.func @transform_0(%arg0: i32) -> (i32, i32) {
    %c0_i32 = arith.constant 0 : i32
    %c0_i32_0 = arith.constant 0 : i32
    return %arg0, %c0_i32 : i32, i32
  }
  func.func @transform_1(%arg0: i32) -> (i32, i32) {
    %c0_i32 = arith.constant 0 : i32
    %c0_i32_0 = arith.constant 0 : i32
    return %arg0, %c0_i32 : i32, i32
  }
  func.func @transform_2(%arg0: i32) -> (i32, i32) {
    %c0_i32 = arith.constant 0 : i32
    %c0_i32_0 = arith.constant 0 : i32
    %c0_i32_1 = arith.constant 0 : i32
    return %c0_i32, %c0_i32_0 : i32, i32
  }
  func.func @transform_3(%arg0: i32) -> (i32, i32) {
    %c0_i32 = arith.constant 0 : i32
    %c0_i32_0 = arith.constant 0 : i32
    %c0_i32_1 = arith.constant 0 : i32
    return %c0_i32, %c0_i32_0 : i32, i32
  }
  func.func @transform_4(%arg0: i32) -> (i32, i32) {
    %c0_i32 = arith.constant 0 : i32
    %c0_i32_0 = arith.constant 0 : i32
    %c0_i32_1 = arith.constant 0 : i32
    return %c0_i32, %c0_i32_0 : i32, i32
  }
  func.func @transform_5(%arg0: i32) -> (i32, i32) {
    %c0_i32 = arith.constant 0 : i32
    %c0_i32_0 = arith.constant 0 : i32
    %c0_i32_1 = arith.constant 0 : i32
    return %c0_i32, %c0_i32_0 : i32, i32
  }
  func.func @transform_6(%arg0: i32) -> (i32, i32) {
    %c0_i32 = arith.constant 0 : i32
    %c0_i32_0 = arith.constant 0 : i32
    %c0_i32_1 = arith.constant 0 : i32
    return %c0_i32, %c0_i32_0 : i32, i32
  }
  func.func @transform_7(%arg0: i32) -> (i32, i32) {
    %c0_i32 = arith.constant 0 : i32
    %c0_i32_0 = arith.constant 0 : i32
    return %arg0, %c0_i32 : i32, i32
  }
  func.func @transform_8(%arg0: i32) -> (i32, i32) {
    %c0_i32 = arith.constant 0 : i32
    %c0_i32_0 = arith.constant 0 : i32
    return %arg0, %c0_i32 : i32, i32
  }
}

</mosaic_0001>

<llo_original>
// kernel: tpu_custom_call.1
$region0: #{tpu_custom_call.1}
  #allocation0 [shape = 'u32[]', space=smem, size = 0x4, offset = 0x4, fixed_abs, tag = 'smem constant byte address 0x4 - core index']
  #allocation1 [shape = 'u32[72,128]{1,0:T(1,128)}', space=vmem, size = 0x9000, scoped, tag = 'internal scratch']
  %s0 = inlined_call_operand.hbm [shape: bf16[8,128], index: 0, kind: input, shape index: {}]
  %s1 = inlined_call_operand.hbm [shape: bf16[8,128], index: 1, kind: input, shape index: {}]
  %s2 = inlined_call_operand.hbm [shape: bf16[128,128], index: 2, kind: input, shape index: {}]
  %s3 = inlined_call_operand.vmem [shape: f32[1,128], index: 3, kind: input, shape index: {}]
  %s4 = inlined_call_operand.hbm [shape: bf16[128,128], index: 4, kind: input, shape index: {}]
  %s5 = inlined_call_operand.vmem [shape: f32[1,128], index: 5, kind: input, shape index: {}]
  %s6 = inlined_call_operand.vmem [shape: f32[1,128], index: 6, kind: input, shape index: {}]
  %s7 = inlined_call_operand.hbm [shape: f32[8,128], index: 7, kind: output, shape index: {0}]
  %s8 = inlined_call_operand.hbm [shape: f32[8,128], index: 8, kind: output, shape index: {1}]
  %9 = xla_tuple %s7, %s8
  %s10 = sld [smem:[#allocation0]]
  $region62: #{tpu_custom_call.1} parent=0
    _
  %s12 = ssub.s32 1, %s10
  %s13 = scalar_select 0, %s12, %s10
  $region1: #{tpu_custom_call.1} parent=0
    #allocation2 [shape = 'u8[2048]{0}', space=vmem, size = 0x800, scoped, tag = 'input window, operand 0, single buffered']
    #allocation3 [shape = 's32[1]{0}', space=sflag, size = 0x4, scoped, tag = 'scoped memory for tpu_custom_call.1']
    #allocation4 [shape = 's32[1]{0}', space=sflag, size = 0x4, scoped, tag = 'scoped memory for tpu_custom_call.1']
    #allocation5 [shape = 'u8[2048]{0}', space=vmem, size = 0x800, scoped, tag = 'input window, operand 1, single buffered']
    #allocation6 [shape = 's32[1]{0}', space=sflag, size = 0x4, scoped, tag = 'scoped memory for tpu_custom_call.1']
    #allocation7 [shape = 'u8[32768]{0}', space=vmem, size = 0x8000, scoped, tag = 'input window, operand 2, single buffered']
    #allocation8 [shape = 'u8[32768]{0}', space=vmem, size = 0x8000, scoped, tag = 'input window, operand 4, single buffered']
    #allocation9 [shape = 's32[1]{0}', space=sflag, size = 0x4, scoped, tag = 'scoped memory for tpu_custom_call.1']
    #allocation10 [shape = 'u8[4096]{0}', space=vmem, size = 0x1000, scoped, tag = 'output window, operand 0, single buffered']
    #allocation11 [shape = 'u8[4096]{0}', space=vmem, size = 0x1000, scoped, tag = 'output window, operand 1, single buffered']
    #allocation12 [shape = 's32[1]{0}', space=sflag, size = 0x4, scoped, tag = 'scoped memory for tpu_custom_call.1']
    %14 = vsyncpa [#allocation3], 0
    %15 = vsyncpa [#allocation6], 0
    %16 = vsyncpa [#allocation9], 0
    %17 = vsyncpa [#allocation4], 0
    %18 = vsyncpa [#allocation12], 0
    // Predicated region
    $region2: #{tpu_custom_call.1} parent=1 // pred_check
      _
    $region3: #{tpu_custom_call.1} parent=1 // pred_check_branch
      %20 = sbr.rel (0) target = $region5
    $region4: #{tpu_custom_call.1} parent=1 // pred_region
      %22 = vsyncadd [#allocation3], 0
      %s24 = sshll.u32 %s0, 4
      %s25 = int_to_ptr.hbm [resolvable:$true] %s24
      %s26 = sshll.u32 [#allocation2], 4
      %s27 = int_to_ptr.vmem [resolvable:$true] %s26
      %29 = dma.hbm_to_vmem [thread:$0]  %s25, 64, %s27, [#allocation3]
    $region5: #{tpu_custom_call.1} parent=1 // pred_fallthru
      _
    // Predicated region
    $region6: #{tpu_custom_call.1} parent=1 // pred_check
      _
    $region7: #{tpu_custom_call.1} parent=1 // pred_check_branch
      %31 = sbr.rel (0) target = $region9
    $region8: #{tpu_custom_call.1} parent=1 // pred_region
      %33 = vsyncadd [#allocation6], 0
      %s35 = sshll.u32 %s1, 4
      %s36 = int_to_ptr.hbm [resolvable:$true] %s35
      %s37 = sshll.u32 [#allocation5], 4
      %s38 = int_to_ptr.vmem [resolvable:$true] %s37
      %40 = dma.hbm_to_vmem [thread:$0]  %s36, 64, %s38, [#allocation6]
    $region9: #{tpu_custom_call.1} parent=1 // pred_fallthru
      _
    // Predicated region
    $region10: #{tpu_custom_call.1} parent=1 // pred_check
      _
    $region11: #{tpu_custom_call.1} parent=1 // pred_check_branch
      %42 = sbr.rel (0) target = $region13
    $region12: #{tpu_custom_call.1} parent=1 // pred_region
      %44 = vsyncadd [#allocation6], 0
      %s45 = sshll.u32 %s2, 4
      %s46 = int_to_ptr.hbm [resolvable:$true] %s45
      %s47 = sshll.u32 [#allocation7], 4
      %s48 = int_to_ptr.vmem [resolvable:$true] %s47
      %53 = dma.hbm_to_vmem [thread:$0]  %s46, 1024, %s48, [#allocation6], 64, 64, 4
    $region13: #{tpu_custom_call.1} parent=1 // pred_fallthru
      _
    // Predicated region
    $region14: #{tpu_custom_call.1} parent=1 // pred_check
      _
    $region15: #{tpu_custom_call.1} parent=1 // pred_check_branch
      %55 = sbr.rel (0) target = $region17
    $region16: #{tpu_custom_call.1} parent=1 // pred_region
      _
    $region17: #{tpu_custom_call.1} parent=1 // pred_fallthru
      _
    // Predicated region
    $region18: #{tpu_custom_call.1} parent=1 // pred_check
      _
    $region19: #{tpu_custom_call.1} parent=1 // pred_check_branch
      %57 = sbr.rel (0) target = $region21
    $region20: #{tpu_custom_call.1} parent=1 // pred_region
      %59 = vsyncadd [#allocation9], 0
      %s60 = sshll.u32 %s4, 4
      %s61 = int_to_ptr.hbm [resolvable:$true] %s60
      %s62 = sshll.u32 [#allocation8], 4
      %s63 = int_to_ptr.vmem [resolvable:$true] %s62
      %68 = dma.hbm_to_vmem [thread:$0]  %s61, 1024, %s63, [#allocation9], 64, 64, 4
    $region21: #{tpu_custom_call.1} parent=1 // pred_fallthru
      _
    // Predicated region
    $region22: #{tpu_custom_call.1} parent=1 // pred_check
      _
    $region23: #{tpu_custom_call.1} parent=1 // pred_check_branch
      %70 = sbr.rel (0) target = $region25
    $region24: #{tpu_custom_call.1} parent=1 // pred_region
      _
    $region25: #{tpu_custom_call.1} parent=1 // pred_fallthru
      _
    // Predicated region
    $region26: #{tpu_custom_call.1} parent=1 // pred_check
      _
    $region27: #{tpu_custom_call.1} parent=1 // pred_check_branch
      %72 = sbr.rel (0) target = $region29
    $region28: #{tpu_custom_call.1} parent=1 // pred_region
      _
    $region29: #{tpu_custom_call.1} parent=1 // pred_fallthru
      _
    // Predicated region
    $region30: #{tpu_custom_call.1} parent=1 // pred_check
      _
    $region31: #{tpu_custom_call.1} parent=1 // pred_check_branch
      %74 = sbr.rel (0) target = $region33
    $region32: #{tpu_custom_call.1} parent=1 // pred_region
      %76 = dma.done [#allocation3], 64
    $region33: #{tpu_custom_call.1} parent=1 // pred_fallthru
      _
    // Predicated region
    $region34: #{tpu_custom_call.1} parent=1 // pred_check
      _
    $region35: #{tpu_custom_call.1} parent=1 // pred_check_branch
      %78 = sbr.rel (0) target = $region37
    $region36: #{tpu_custom_call.1} parent=1 // pred_region
      %80 = dma.done [#allocation6], 64
    $region37: #{tpu_custom_call.1} parent=1 // pred_fallthru
      _
    // Predicated region
    $region38: #{tpu_custom_call.1} parent=1 // pred_check
      _
    $region39: #{tpu_custom_call.1} parent=1 // pred_check_branch
      %82 = sbr.rel (0) target = $region41
    $region40: #{tpu_custom_call.1} parent=1 // pred_region
      %84 = dma.done [#allocation6], 1024
    $region41: #{tpu_custom_call.1} parent=1 // pred_fallthru
      _
    // Predicated region
    $region42: #{tpu_custom_call.1} parent=1 // pred_check
      _
    $region43: #{tpu_custom_call.1} parent=1 // pred_check_branch
      %86 = sbr.rel (0) target = $region45
    $region44: #{tpu_custom_call.1} parent=1 // pred_region
      %88 = dma.done [#allocation9], 1024
    $region45: #{tpu_custom_call.1} parent=1 // pred_fallthru
      _
    %v89 = vld [vmem:[#allocation2] sm:$0xf]
    %v90 = vunpack.c.l.bf16 %v89
    %v91 = vld [vmem:[#allocation5] sm:$0xf]
    %v92 = vunpack.c.l.bf16 %v91
    %v93 = vmul.f32 %v90, %v92
    %v94 = vpack.c.bf16 %v93, %v93
    %v95 = vld [vmem:[#allocation7] sm:$0xf]
    %v96 = vld [vmem:[#allocation7 + $0x4] sm:$0xf]
    %v97 = vld [vmem:[#allocation7 + $0x8] sm:$0xf]
    %v98 = vld [vmem:[#allocation7 + $0xc] sm:$0xf]
    %v99 = vld [vmem:[#allocation7 + $0x10] sm:$0xf]
    %v100 = vld [vmem:[#allocation7 + $0x14] sm:$0xf]
    %v101 = vld [vmem:[#allocation7 + $0x18] sm:$0xf]
    %v102 = vld [vmem:[#allocation7 + $0x1c] sm:$0xf]
    %v103 = vld [vmem:[#allocation7 + $0x20] sm:$0xf]
    %v104 = vld [vmem:[#allocation7 + $0x24] sm:$0xf]
    %v105 = vld [vmem:[#allocation7 + $0x28] sm:$0xf]
    %v106 = vld [vmem:[#allocation7 + $0x2c] sm:$0xf]
    %v107 = vld [vmem:[#allocation7 + $0x30] sm:$0xf]
    %v108 = vld [vmem:[#allocation7 + $0x34] sm:$0xf]
    %v109 = vld [vmem:[#allocation7 + $0x38] sm:$0xf]
    %v110 = vld [vmem:[#allocation7 + $0x3c] sm:$0xf]
    %v111 = vld [vmem:[%s3] sm:$0x1]
    %v113 = vperm.slane %v111, 0
    %v131 = vunpack.c.l.b16 %v95
    %v132 = vunpack.c.l.b16 %v96
    %v133 = vunpack.c.l.b16 %v97
    %v134 = vunpack.c.l.b16 %v98
    %v135 = vunpack.c.l.b16 %v99
    %v136 = vunpack.c.l.b16 %v100
    %v137 = vunpack.c.l.b16 %v101
    %v138 = vunpack.c.l.b16 %v102
    %v139 = vunpack.c.l.b16 %v103
    %v140 = vunpack.c.l.b16 %v104
    %v141 = vunpack.c.l.b16 %v105
    %v142 = vunpack.c.l.b16 %v106
    %v143 = vunpack.c.l.b16 %v107
    %v144 = vunpack.c.l.b16 %v108
    %v145 = vunpack.c.l.b16 %v109
    %v146 = vunpack.c.l.b16 %v110
    %v147 = vpack.c.b16 %v132, %v131
    %v148 = vpack.c.b16 %v134, %v133
    %v149 = vpack.c.b16 %v136, %v135
    %v150 = vpack.c.b16 %v138, %v137
    %v151 = vpack.c.b16 %v140, %v139
    %v152 = vpack.c.b16 %v142, %v141
    %v153 = vpack.c.b16 %v144, %v143
    %v154 = vpack.c.b16 %v146, %v145
    %163 = vmatpush.bf16.xpose.msra.mxu0 %v154
    %164 = vmatpush.bf16.xpose.msra.mxu0 %v153
    %165 = vmatpush.bf16.xpose.msra.mxu0 %v152
    %166 = vmatpush.bf16.xpose.msra.mxu0 %v151
    %167 = vmatpush.bf16.xpose.msra.mxu0 %v150
    %168 = vmatpush.bf16.xpose.msra.mxu0 %v149
    %169 = vmatpush.bf16.xpose.msra.mxu0 %v148
    %170 = vmatpush.bf16.xpose.msra.mxu0 %v147
    %171 = vmatmul.bf16.gmra.mxu0 %v94
    %v172 = vpop.f32.mrf.mxu0
    %v173 = vadd.f32 %v113, %v172
    %v174 = vpop.f32.mrf.mxu0
    %175 = vdwg.mxu0
    %v176 = vmax.f32 %v173, 0.0
    %v177 = vld [vmem:[%s6] sm:$0x1]
    %v179 = vperm.slane %v177, 0
    %v181 = vadd.f32 %v176, %v179
    %182 = vst [vmem:[#allocation11] sm:$0xff] %v181
    %v183 = vpack.c.bf16 %v181, %v181
    %v184 = vld [vmem:[#allocation8] sm:$0xf]
    %v185 = vld [vmem:[#allocation8 + $0x4] sm:$0xf]
    %v186 = vld [vmem:[#allocation8 + $0x8] sm:$0xf]
    %v187 = vld [vmem:[#allocation8 + $0xc] sm:$0xf]
    %v188 = vld [vmem:[#allocation8 + $0x10] sm:$0xf]
    %v189 = vld [vmem:[#allocation8 + $0x14] sm:$0xf]
    %v190 = vld [vmem:[#allocation8 + $0x18] sm:$0xf]
    %v191 = vld [vmem:[#allocation8 + $0x1c] sm:$0xf]
    %v192 = vld [vmem:[#allocation8 + $0x20] sm:$0xf]
    %v193 = vld [vmem:[#allocation8 + $0x24] sm:$0xf]
    %v194 = vld [vmem:[#allocation8 + $0x28] sm:$0xf]
    %v195 = vld [vmem:[#allocation8 + $0x2c] sm:$0xf]
    %v196 = vld [vmem:[#allocation8 + $0x30] sm:$0xf]
    %v197 = vld [vmem:[#allocation8 + $0x34] sm:$0xf]
    %v198 = vld [vmem:[#allocation8 + $0x38] sm:$0xf]
    %v199 = vld [vmem:[#allocation8 + $0x3c] sm:$0xf]
    %v200 = vld [vmem:[%s5] sm:$0x1]
    %v202 = vperm.slane %v200, 0
    %v220 = vunpack.c.l.b16 %v184
    %v221 = vunpack.c.l.b16 %v185
    %v222 = vunpack.c.l.b16 %v186
    %v223 = vunpack.c.l.b16 %v187
    %v224 = vunpack.c.l.b16 %v188
    %v225 = vunpack.c.l.b16 %v189
    %v226 = vunpack.c.l.b16 %v190
    %v227 = vunpack.c.l.b16 %v191
    %v228 = vunpack.c.l.b16 %v192
    %v229 = vunpack.c.l.b16 %v193
    %v230 = vunpack.c.l.b16 %v194
    %v231 = vunpack.c.l.b16 %v195
    %v232 = vunpack.c.l.b16 %v196
    %v233 = vunpack.c.l.b16 %v197
    %v234 = vunpack.c.l.b16 %v198
    %v235 = vunpack.c.l.b16 %v199
    %v236 = vpack.c.b16 %v221, %v220
    %v237 = vpack.c.b16 %v223, %v222
    %v238 = vpack.c.b16 %v225, %v224
    %v239 = vpack.c.b16 %v227, %v226
    %v240 = vpack.c.b16 %v229, %v228
    %v241 = vpack.c.b16 %v231, %v230
    %v242 = vpack.c.b16 %v233, %v232
    %v243 = vpack.c.b16 %v235, %v234
    %252 = vmatpush.bf16.xpose.msra.mxu0 %v243
    %253 = vmatpush.bf16.xpose.msra.mxu0 %v242
    %254 = vmatpush.bf16.xpose.msra.mxu0 %v241
    %255 = vmatpush.bf16.xpose.msra.mxu0 %v240
    %256 = vmatpush.bf16.xpose.msra.mxu0 %v239
    %257 = vmatpush.bf16.xpose.msra.mxu0 %v238
    %258 = vmatpush.bf16.xpose.msra.mxu0 %v237
    %259 = vmatpush.bf16.xpose.msra.mxu0 %v236
    %260 = vmatmul.bf16.gmra.mxu0 %v183
    %v261 = vpop.f32.mrf.mxu0
    %v262 = vadd.f32 %v202, %v261
    %v263 = vpop.f32.mrf.mxu0
    %264 = vdwg.mxu0
    %265 = vst [vmem:[#allocation10] sm:$0xff] %v262
    // Predicated region
    $region46: #{tpu_custom_call.1} parent=1 // pred_check
      _
    $region47: #{tpu_custom_call.1} parent=1 // pred_check_branch
      %267 = sbr.rel (0) target = $region49
    $region48: #{tpu_custom_call.1} parent=1 // pred_region
      %269 = vsyncadd [#allocation4], 0
      %s271 = sshll.u32 [#allocation10], 4
      %s272 = int_to_ptr.vmem [resolvable:$true] %s271
      %s273 = sshll.u32 %s7, 4
      %s274 = int_to_ptr.hbm [resolvable:$true] %s273
      %276 = dma.vmem_to_hbm [thread:$0]  %s272, 128, %s274, [#allocation4]
    $region49: #{tpu_custom_call.1} parent=1 // pred_fallthru
      _
    // Predicated region
    $region50: #{tpu_custom_call.1} parent=1 // pred_check
      _
    $region51: #{tpu_custom_call.1} parent=1 // pred_check_branch
      %278 = sbr.rel (0) target = $region53
    $region52: #{tpu_custom_call.1} parent=1 // pred_region
      %280 = vsyncadd [#allocation12], 0
      %s282 = sshll.u32 [#allocation11], 4
      %s283 = int_to_ptr.vmem [resolvable:$true] %s282
      %s284 = sshll.u32 %s8, 4
      %s285 = int_to_ptr.hbm [resolvable:$true] %s284
      %287 = dma.vmem_to_hbm [thread:$0]  %s283, 128, %s285, [#allocation12]
    $region53: #{tpu_custom_call.1} parent=1 // pred_fallthru
      _
    // Predicated region
    $region54: #{tpu_custom_call.1} parent=1 // pred_check
      _
    $region55: #{tpu_custom_call.1} parent=1 // pred_check_branch
      %289 = sbr.rel (0) target = $region57
    $region56: #{tpu_custom_call.1} parent=1 // pred_region
      %291 = dma.done [#allocation4], 128
    $region57: #{tpu_custom_call.1} parent=1 // pred_fallthru
      _
    // Predicated region
    $region58: #{tpu_custom_call.1} parent=1 // pred_check
      _
    $region59: #{tpu_custom_call.1} parent=1 // pred_check_branch
      %293 = sbr.rel (0) target = $region61
    $region60: #{tpu_custom_call.1} parent=1 // pred_region
      %295 = dma.done [#allocation12], 128
    $region61: #{tpu_custom_call.1} parent=1 // pred_fallthru
      _
    %296 = vsyncpa [#allocation3], 1
    %297 = vsyncpa [#allocation6], 1
    %298 = vsyncpa [#allocation9], 1
    %299 = vsyncpa [#allocation4], 1
    %300 = vsyncpa [#allocation12], 1

</llo_original>
